<compile_context>
chip_gen: v6e
topology: v6e:2x2x1
jax: 0.10.0
libtpu: 0.0.40
codegen_flags: <defaults>
</compile_context>

<pallas_src>
import jax
import jax.numpy as jnp
from jax.experimental import pallas as pl
from jax.experimental.pallas import tpu as pltpu


_VMEM_TILE_BUDGET = 24 * 1024 * 1024   # bytes of VMEM spent on tiles (safe on all gens)
_VMEM_LIMIT_BYTES = 32 * 1024 * 1024   # scoped limit: > v5e 16 MiB default, < v7x 64 MiB phys
_TM_CAP = 2048                          # review-recommended upper end of the row-tile range


def _round_up(v: int, mult: int) -> int:
    return ((v + mult - 1) // mult) * mult


def _choose_tm(m: int, width: int, n: int,
               x_bytes: int, p_bytes: int, out_bytes: int) -> int:
    """Largest row tile that fits the VMEM budget (double-buffered pipeline)."""
    fixed = 2 * width * n * p_bytes                       # resident pattern matrix (2 bufs)
    per_row = 2 * width * x_bytes + 2 * n * out_bytes     # double-buffered x tile + out tile
    tm = (_VMEM_TILE_BUDGET - fixed) // per_row
    tm = max(8, min(int(tm), _TM_CAP))
    tm = (tm // 8) * 8                                    # sublane alignment (8)
    # Never larger than the (sublane-rounded) total row count.
    tm = min(tm, _round_up(max(m, 1), 8))
    # Keep >=2 grid steps when there is real work, so v7x's 2 TCs both run.
    if m >= 1024:
        tm = min(tm, _round_up(pl.cdiv(m, 2), 8))
    return max(tm, 8)


def _pattern_dot_kernel(x_ref, pt_ref, o_ref):
    # x_ref:  (tm, width)  tile of flattened input rows
    # pt_ref: (width, n)   pre-transposed patterns, resident across the grid
    # o_ref:  (tm, n)      similarity scores for this row tile
    o_ref[...] = jnp.dot(
        x_ref[...], pt_ref[...], preferred_element_type=jnp.float32
    ).astype(o_ref.dtype)


def learnable_pattern_dot(x: jax.Array, patterns: jax.Array, *, tm: int | None = None) -> jax.Array:
    """x: (B, *A, width), patterns: (n, width) -> (B, *A, n)."""
    width = x.shape[-1]
    n = patterns.shape[0]
    lead = x.shape[:-1]

    x_flat = x.reshape(-1, width)
    m = x_flat.shape[0]

    # One tiny host/XLA-side transpose so the kernel never transposes per step.
    patterns_t = patterns.T  # (width, n)

    out_dtype = x.dtype
    if tm is None:
        tm = _choose_tm(
            m, width, n,
            jnp.dtype(x.dtype).itemsize,
            jnp.dtype(patterns.dtype).itemsize,
            jnp.dtype(out_dtype).itemsize,
        )

    grid = (pl.cdiv(m, tm),)  # ragged last block handled by Pallas masking

    out = pl.pallas_call(
        _pattern_dot_kernel,
        out_shape=jax.ShapeDtypeStruct((m, n), out_dtype),
        grid_spec=pltpu.PrefetchScalarGridSpec(
            num_scalar_prefetch=0,
            grid=grid,
            in_specs=[
                pl.BlockSpec((tm, width), lambda i: (i, 0)),  # input row tile
                pl.BlockSpec((width, n), lambda i: (0, 0)),   # full (transposed) patterns
            ],
            out_specs=pl.BlockSpec((tm, n), lambda i: (i, 0)),
        ),
        compiler_params=pltpu.CompilerParams(
            dimension_semantics=("parallel",),
            vmem_limit_bytes=_VMEM_LIMIT_BYTES,
        ),
    )(x_flat, patterns_t)

    return out.reshape(lead + (n,))


def make_params(n: int, width: int, key: jax.Array) -> jax.Array:
    """Deterministic synthetic init mirroring the PyTorch __init__ shapes."""
    k = jax.random.uniform(key, (n, width - 1), dtype=jnp.float32)  # ~ torch.rand
    l = jnp.ones((n, 1), dtype=jnp.float32)                          # fixed ones column
    return jnp.concatenate([k, l], axis=1)                           # (n, width)


if __name__ == "__main__":
    key = jax.random.PRNGKey(0)
    k_x, k_p, k_x2 = jax.random.split(key, 3)

    # Small shapes consistent with the module: x of shape (B, *A, width)
    B, A, width, n = 2, 8, 32, 16
    x = jax.random.normal(k_x, (B, A, width), dtype=jnp.float32)
    patterns = make_params(n, width, k_p)

    out = learnable_pattern_dot(x, patterns)
    out = jax.block_until_ready(out)

    ref = jnp.einsum("baw,nw->ban", x, patterns)
    assert out.shape == (B, A, n), out.shape
    assert jnp.allclose(out, ref, atol=1e-5, rtol=1e-5), "mismatch vs reference"

    # Second case: row count not a multiple of the tile -> exercises the
    # ragged (masked) last block, which replaced the old pad/slice HBM copies.
    x2 = jax.random.normal(k_x2, (3, 5, width), dtype=jnp.float32)  # m = 15 rows
    out2 = jax.block_until_ready(learnable_pattern_dot(x2, patterns))
    ref2 = jnp.einsum("baw,nw->ban", x2, patterns)
    assert out2.shape == (3, 5, n), out2.shape
    assert jnp.allclose(out2, ref2, atol=1e-5, rtol=1e-5), "mismatch vs reference (ragged)"

    print("KERNEL_OK")
</pallas_src>

<mosaic_0001>
module attributes {stable_mosaic.version = 11 : i64} {
  func.func @_pattern_dot_kernel(%arg0: i32, %arg1: memref<16x32xf32, #tpu.memory_space<vmem>>, %arg2: memref<32x16xf32, #tpu.memory_space<vmem>>, %arg3: memref<16x16xf32, #tpu.memory_space<vmem>>) attributes {dimension_semantics = [#tpu.dimension_semantics<parallel>], iteration_bounds = array<i64: 1>, scalar_prefetch = 0 : i64, scratch_operands = 0 : i64, tpu.core_type = #tpu.core_type<tc>, window_params = [{transform_indices = @transform_0, window_bounds = array<i64: 16, 32>}, {pipeline_mode = #tpu.pipeline_mode<synchronous>, transform_indices = @transform_1, window_bounds = array<i64: 32, 16>}, {transform_indices = @transform_2, window_bounds = array<i64: 16, 16>}]} {
    %c0 = arith.constant 0 : index
    %c0_0 = arith.constant 0 : index
    %0 = vector.load %arg1[%c0, %c0_0] : memref<16x32xf32, #tpu.memory_space<vmem>>, vector<16x32xf32>
    %c0_1 = arith.constant 0 : index
    %c0_2 = arith.constant 0 : index
    %1 = vector.load %arg2[%c0_1, %c0_2] : memref<32x16xf32, #tpu.memory_space<vmem>>, vector<32x16xf32>
    %cst = arith.constant dense<0.000000e+00> : vector<16x16xf32>
    %2 = tpu.matmul %0, %1, %cst {dimension_numbers = #tpu.dot_dimension_numbers<[1], [0], [0], [1], [0, 0, 1, 1], [], []>} : vector<16x32xf32>, vector<32x16xf32>, vector<16x16xf32> -> vector<16x16xf32>
    %c0_3 = arith.constant 0 : index
    %c0_4 = arith.constant 0 : index
    %3 = vector.load %arg3[%c0_3, %c0_4] : memref<16x16xf32, #tpu.memory_space<vmem>>, vector<16x16xf32>
    tpu.vector_store %arg3[%c0_3, %c0_4], %2 {strides = array<i32>} : memref<16x16xf32, #tpu.memory_space<vmem>>, vector<16x16xf32>,
    return
  }
  func.func @transform_0(%arg0: i32) -> (i32, i32) {
    %c0_i32 = arith.constant 0 : i32
    %c0_i32_0 = arith.constant 0 : i32
    return %arg0, %c0_i32 : i32, i32
  }
  func.func @transform_1(%arg0: i32) -> (i32, i32) {
    %c0_i32 = arith.constant 0 : i32
    %c0_i32_0 = arith.constant 0 : i32
    %c0_i32_1 = arith.constant 0 : i32
    return %c0_i32, %c0_i32_0 : i32, i32
  }
  func.func @transform_2(%arg0: i32) -> (i32, i32) {
    %c0_i32 = arith.constant 0 : i32
    %c0_i32_0 = arith.constant 0 : i32
    return %arg0, %c0_i32 : i32, i32
  }
}

</mosaic_0001>

<llo_original>
// kernel: tpu_custom_call.1
$region0: #{tpu_custom_call.1}
  #allocation0 [shape = 'u32[]', space=smem, size = 0x4, offset = 0x4, fixed_abs, tag = 'smem constant byte address 0x4 - core index']
  #allocation1 [shape = 'u32[144,128]{1,0:T(1,128)}', space=vmem, size = 0x12000, scoped, tag = 'internal scratch']
  %s0 = inlined_call_operand.vmem [shape: f32[16,32], index: 0, kind: input, shape index: {}]
  %s1 = inlined_call_operand.vmem [shape: f32[32,16], index: 1, kind: input, shape index: {}]
  %s2 = inlined_call_operand.hbm [shape: f32[16,16], index: 2, kind: output, shape index: {}]
  %s3 = sld [smem:[#allocation0]]
  $region18: #{tpu_custom_call.1} parent=0
    _
  %s5 = ssub.s32 1, %s3
  %s6 = scalar_select 0, %s5, %s3
  $region1: #{tpu_custom_call.1} parent=0
    #allocation2 [shape = 'u8[8192]{0}', space=vmem, size = 0x2000, scoped, tag = 'output window, operand 0, single buffered']
    #allocation3 [shape = 's32[1]{0}', space=sflag, size = 0x4, scoped, tag = 'scoped memory for tpu_custom_call.1']
    %7 = vsyncpa [#allocation3], 0
    // Predicated region
    $region2: #{tpu_custom_call.1} parent=1 // pred_check
      _
    $region3: #{tpu_custom_call.1} parent=1 // pred_check_branch
      %9 = sbr.rel (0) target = $region5
    $region4: #{tpu_custom_call.1} parent=1 // pred_region
      _
    $region5: #{tpu_custom_call.1} parent=1 // pred_fallthru
      _
    // Predicated region
    $region6: #{tpu_custom_call.1} parent=1 // pred_check
      _
    $region7: #{tpu_custom_call.1} parent=1 // pred_check_branch
      %11 = sbr.rel (0) target = $region9
    $region8: #{tpu_custom_call.1} parent=1 // pred_region
      _
    $region9: #{tpu_custom_call.1} parent=1 // pred_fallthru
      _
    %v12 = vld [vmem:[%s0] sm:$0xff]
    %v13 = vld [vmem:[%s0 + $0x8] sm:$0xff]
    %v14 = vld [vmem:[%s1] sm:$0xff]
    %v15 = vld [vmem:[%s1 + $0x8] sm:$0xff]
    %v16 = vld [vmem:[%s1 + $0x10] sm:$0xff]
    %v17 = vld [vmem:[%s1 + $0x18] sm:$0xff]
    %vm18 = vcmask 261120
    %v20 = vsel %vm18, %v12, 0
    %v23 = vsel %vm18, %v13, 0
    %25 = vmatprep.subr.mxu0 0.0
    %26 = vmatpush1.msra.mxu0 0.0
    %27 = vmatprep.subr.mxu0 0.0
    %28 = vmatpush1.msra.mxu0 0.0
    %29 = vmatprep.subr.mxu0 0.0
    %30 = vmatpush1.msra.mxu0 0.0
    %31 = vmatprep.subr.mxu0 0.0
    %32 = vmatpush1.msra.mxu0 0.0
    %33 = vmatprep.subr.mxu0 0.0
    %34 = vmatpush1.msra.mxu0 0.0
    %35 = vmatprep.subr.mxu0 0.0
    %36 = vmatpush1.msra.mxu0 0.0
    %37 = vmatprep.subr.mxu0 0.0
    %38 = vmatpush1.msra.mxu0 0.0
    %39 = vmatprep.subr.mxu0 0.0
    %40 = vmatpush1.msra.mxu0 0.0
    %41 = vmatprep.subr.mxu0 0.0
    %42 = vmatpush1.msra.mxu0 0.0
    %43 = vmatprep.subr.mxu0 0.0
    %44 = vmatpush1.msra.mxu0 0.0
    %45 = vmatprep.subr.mxu0 0.0
    %46 = vmatpush1.msra.mxu0 0.0
    %47 = vmatprep.subr.mxu0 0.0
    %48 = vmatpush1.msra.mxu0 0.0
    %49 = vmatprep.subr.mxu0 0.0
    %50 = vmatpush1.msra.mxu0 %v17
    %51 = vmatprep.subr.mxu0 0.0
    %52 = vmatpush1.msra.mxu0 %v16
    %53 = vmatprep.subr.mxu0 0.0
    %54 = vmatpush1.msra.mxu0 %v15
    %55 = vmatprep.subr.mxu0 0.0
    %56 = vmatpush1.msra.mxu0 %v14
    %57 = vmatprep.subr.mxu0 0.0
    %58 = vmatpush2.msra.mxu0 0.0
    %59 = vmatprep.subr.mxu0 0.0
    %60 = vmatpush2.msra.mxu0 0.0
    %61 = vmatprep.subr.mxu0 0.0
    %62 = vmatpush2.msra.mxu0 0.0
    %63 = vmatprep.subr.mxu0 0.0
    %64 = vmatpush2.msra.mxu0 0.0
    %65 = vmatprep.subr.mxu0 0.0
    %66 = vmatpush2.msra.mxu0 0.0
    %67 = vmatprep.subr.mxu0 0.0
    %68 = vmatpush2.msra.mxu0 0.0
    %69 = vmatprep.subr.mxu0 0.0
    %70 = vmatpush2.msra.mxu0 0.0
    %71 = vmatprep.subr.mxu0 0.0
    %72 = vmatpush2.msra.mxu0 0.0
    %73 = vmatprep.subr.mxu0 0.0
    %74 = vmatpush2.msra.mxu0 0.0
    %75 = vmatprep.subr.mxu0 0.0
    %76 = vmatpush2.msra.mxu0 0.0
    %77 = vmatprep.subr.mxu0 0.0
    %78 = vmatpush2.msra.mxu0 0.0
    %79 = vmatprep.subr.mxu0 0.0
    %80 = vmatpush2.msra.mxu0 0.0
    %81 = vmatprep.subr.mxu0 0.0
    %82 = vmatpush2.msra.mxu0 0.0
    %83 = vmatprep.subr.mxu0 0.0
    %84 = vmatpush2.msra.mxu0 0.0
    %85 = vmatprep.subr.mxu0 0.0
    %86 = vmatpush2.msra.mxu0 0.0
    %87 = vmatprep.subr.mxu0 0.0
    %88 = vmatpush2.msra.mxu0 0.0
    %89 = vmatprep.mubr.f32.mxu0 0.0
    %90 = vmatmul.mubr.f32.gmra.mxu0 %v20
    %v91 = vpop.f32.mrf.mxu0
    %v92 = vadd.f32 0.0, %v91
    %v93 = vpop.f32.mrf.mxu0
    %94 = vmatprep.mubr.f32.mxu0 0.0
    %95 = vmatmul.mubr.f32.gmra.mxu0 %v23
    %v96 = vpop.f32.mrf.mxu0
    %v97 = vadd.f32 0.0, %v96
    %v98 = vpop.f32.mrf.mxu0
    %99 = vdwg.mxu0
    %vm100 = vcmask 130048
    %101 = vst.msk [vmem:[#allocation2] sm:$0xff] %vm100, %v92
    %102 = vst.msk [vmem:[#allocation2 + $0x8] sm:$0xff] %vm100, %v97
    // Predicated region
    $region10: #{tpu_custom_call.1} parent=1 // pred_check
      _
    $region11: #{tpu_custom_call.1} parent=1 // pred_check_branch
      %104 = sbr.rel (0) target = $region13
    $region12: #{tpu_custom_call.1} parent=1 // pred_region
      %s106 = ssub.s32 256, 256
      %107 = vsyncadd [#allocation3], %s106
      %s108 = sshll.u32 [#allocation2], 4
      %s109 = int_to_ptr.vmem [resolvable:$true] %s108
      %114 = dma.vmem_to_hbm [thread:$0]  %s109, 256, %s2, [#allocation3], 128, 128, 8
    $region13: #{tpu_custom_call.1} parent=1 // pred_fallthru
      _
    // Predicated region
    $region14: #{tpu_custom_call.1} parent=1 // pred_check
      _
    $region15: #{tpu_custom_call.1} parent=1 // pred_check_branch
      %116 = sbr.rel (0) target = $region17
    $region16: #{tpu_custom_call.1} parent=1 // pred_region
      %117 = dma.done [#allocation3], 256
    $region17: #{tpu_custom_call.1} parent=1 // pred_fallthru
      _
    %118 = vsyncpa [#allocation3], 1

</llo_original>
